<compile_context>
chip_gen: v7x
topology: tpu7x:2x2x1
jax: 0.10.0
libtpu: 0.0.40
codegen_flags: <defaults>
</compile_context>

<pallas_src>
import functools

import jax
import jax.numpy as jnp
import numpy as np
from jax.experimental import pallas as pl
from jax.experimental.pallas import tpu as pltpu


def _round_up(x, m):
    return (x + m - 1) // m * m


# ---------------------------------------------------------------------------
# Fused kernel: conv-as-one-dot + bias + ReLU + GAP + FC (+ folded BiasLayer_BIC)
# ---------------------------------------------------------------------------
def _fused_kernel(patches_ref, wtap_ref, bconv_ref, wfc_ref, shift_ref,
                  feat_ref, logits_ref, *, B, HW):
    # conv3x3 as ONE MXU dot over the whole contraction:
    #   (B*HW, Kp) bf16  @  (Kp, coutp) bf16  ->  (B*HW, coutp) f32
    y = jnp.dot(patches_ref[...], wtap_ref[...],
                preferred_element_type=jnp.float32)
    y = jnp.maximum(y + bconv_ref[...], 0.0)                 # conv bias + ReLU
    coutp = y.shape[-1]

    # Global average pool.  The reshape only regroups the leading (sublane-major)
    # dim -> no (8,128) tile-boundary relayout; the sum is an XLU sublane reduce.
    feats = jnp.sum(y.reshape(B, HW, coutp), axis=1) * (1.0 / HW)   # (B, coutp) f32
    feat_ref[...] = feats

    # SimpleLinear fc with BiasLayer_BIC scale folded into the weight columns and
    # (scale*bfc + shift) folded into the additive shift.  Tiny matmul, f32 operands.
    logits = jnp.dot(feats, wfc_ref[...], preferred_element_type=jnp.float32)
    logits_ref[...] = logits + shift_ref[...]


# ---------------------------------------------------------------------------
# Wrapper (glue: NCHW->NHWC, wrapper-side im2col, lane padding to 128, bias folds)
# ---------------------------------------------------------------------------
def incremental_net_with_bias_forward(x_nchw, wconv, bconv, wfc, bfc, scale, shift):
    """x_nchw: (B, Cin, H, W) f32; wconv: HWIO (3, 3, Cin, Cout); wfc: torch-style (C, Cout)."""
    x = jnp.transpose(x_nchw, (0, 2, 3, 1))                  # NCHW -> NHWC
    B, H, W, Cin = x.shape
    Cout = wconv.shape[-1]
    C = wfc.shape[0]

    K = 9 * Cin                      # full conv contraction depth
    Kp = _round_up(K, 8)             # 27 -> 32
    coutp = _round_up(Cout, 128)     # lane-dense feature dim
    cp = _round_up(C, 128)           # lane-dense class dim
    HW = H * W
    rows = B * HW

    # im2col (SAME 3x3) done by XLA in the wrapper.  Tap order (dy, dx, cin) matches the
    # row-major reshape of the HWIO conv weight below.
    xp = jnp.pad(x, ((0, 0), (1, 1), (1, 1), (0, 0)))
    taps = [xp[:, dy:dy + H, dx:dx + W, :] for dy in range(3) for dx in range(3)]
    patches = jnp.concatenate(taps, axis=-1).reshape(rows, K)          # (B*H*W, 9*Cin)
    patches = jnp.pad(patches, ((0, 0), (0, Kp - K))).astype(jnp.bfloat16)

    wtaps = jnp.pad(wconv.reshape(K, Cout),
                    ((0, Kp - K), (0, coutp - Cout))).astype(jnp.bfloat16)
    bconv_p = jnp.pad(bconv, (0, coutp - Cout)).reshape(1, coutp).astype(jnp.float32)

    # Fold BiasLayer_BIC: scale into the fc weight columns, fc bias into the shift.
    wfc_fold = (wfc.T * scale[None, :]).astype(jnp.float32)            # (Cout, C)
    wfc_p = jnp.pad(wfc_fold, ((0, coutp - Cout), (0, cp - C)))
    shift_p = jnp.pad(scale * bfc + shift, (0, cp - C)).reshape(1, cp).astype(jnp.float32)

    kernel = functools.partial(_fused_kernel, B=B, HW=HW)

    feats_p, logits_p = pl.pallas_call(
        kernel,
        out_shape=(jax.ShapeDtypeStruct((B, coutp), jnp.float32),
                   jax.ShapeDtypeStruct((B, cp), jnp.float32)),
        # Single grid step: every operand is tiny and VMEM-resident, so a multi-step
        # grid would only add per-step overhead with no DMA overlap to hide.
        grid=(1,),
        in_specs=[
            pl.BlockSpec((rows, Kp), lambda i: (0, 0)),      # im2col patches (bf16)
            pl.BlockSpec((Kp, coutp), lambda i: (0, 0)),     # conv weight (bf16)
            pl.BlockSpec((1, coutp), lambda i: (0, 0)),      # conv bias (f32)
            pl.BlockSpec((coutp, cp), lambda i: (0, 0)),     # fc weight * scale (f32)
            pl.BlockSpec((1, cp), lambda i: (0, 0)),         # scale*bfc + shift (f32)
        ],
        out_specs=(pl.BlockSpec((B, coutp), lambda i: (0, 0)),
                   pl.BlockSpec((B, cp), lambda i: (0, 0))),
        compiler_params=pltpu.CompilerParams(
            dimension_semantics=("arbitrary",),
            vmem_limit_bytes=32 * 1024 * 1024),
    )(patches, wtaps, bconv_p, wfc_p, shift_p)

    feats = feats_p[:, :Cout]
    logits = logits_p[:, :C]
    # mimics: out = fc(features); out['logits'] = bias_layers(logits); out.update(x)
    return {"logits": logits, "features": feats}


# ---------------------------------------------------------------------------
# Pure-JAX f32 reference (correctness check for the Pallas path)
# ---------------------------------------------------------------------------
def _reference(x_nchw, wconv, bconv, wfc, bfc, scale, shift):
    x = jnp.transpose(x_nchw, (0, 2, 3, 1))
    y = jax.lax.conv_general_dilated(
        x, wconv, window_strides=(1, 1), padding="SAME",
        dimension_numbers=("NHWC", "HWIO", "NHWC")) + bconv
    y = jnp.maximum(y, 0.0)
    feats = jnp.mean(y, axis=(1, 2))
    logits = feats @ wfc.T + bfc
    logits = logits * scale + shift
    return feats, logits


if __name__ == "__main__":
    key = jax.random.PRNGKey(0)
    B, Cin, H, W = 2, 3, 16, 16
    Cout = 64                      # proxy convnet out_dim (resnet32-style feature dim)
    task_sizes = [5, 5]            # two incremental tasks -> two BiasLayer_BIC
    nb_classes = sum(task_sizes)

    k = jax.random.split(key, 5)
    x = jax.random.normal(k[0], (B, Cin, H, W), jnp.float32)
    wconv = jax.random.normal(k[1], (3, 3, Cin, Cout), jnp.float32) * 0.1   # HWIO
    bconv = jax.random.normal(k[2], (Cout,), jnp.float32) * 0.1
    wfc = jax.random.normal(k[3], (nb_classes, Cout), jnp.float32) * 0.1    # (out, in)
    bfc = jax.random.normal(k[4], (nb_classes,), jnp.float32) * 0.1

    # BiasLayer_BIC parameters: first task identity, second task corrected.
    alphas = [1.0, 0.75]
    betas = [0.0, -0.1]
    scale = jnp.concatenate(
        [jnp.full((t,), a, jnp.float32) for t, a in zip(task_sizes, alphas)])
    shift = jnp.concatenate(
        [jnp.full((t,), b, jnp.float32) for t, b in zip(task_sizes, betas)])

    out = incremental_net_with_bias_forward(x, wconv, bconv, wfc, bfc, scale, shift)
    logits = jax.block_until_ready(out["logits"])
    feats = jax.block_until_ready(out["features"])

    ref_feats, ref_logits = _reference(x, wconv, bconv, wfc, bfc, scale, shift)
    # bf16 conv operands (f32 accumulation, f32 fc) -> relaxed tolerance vs pure-f32 ref.
    np.testing.assert_allclose(np.asarray(feats), np.asarray(ref_feats),
                               rtol=2e-2, atol=2e-2)
    np.testing.assert_allclose(np.asarray(logits), np.asarray(ref_logits),
                               rtol=2e-2, atol=2e-2)
    print("KERNEL_OK")
</pallas_src>

<mosaic_0001>
module attributes {stable_mosaic.version = 11 : i64} {
  func.func @_fused_kernel(%arg0: i32, %arg1: memref<512x32xbf16, #tpu.memory_space<vmem>>, %arg2: memref<32x128xbf16, #tpu.memory_space<vmem>>, %arg3: memref<1x128xf32, #tpu.memory_space<vmem>>, %arg4: memref<128x128xf32, #tpu.memory_space<vmem>>, %arg5: memref<1x128xf32, #tpu.memory_space<vmem>>, %arg6: memref<2x128xf32, #tpu.memory_space<vmem>>, %arg7: memref<2x128xf32, #tpu.memory_space<vmem>>) attributes {dimension_semantics = [#tpu.dimension_semantics<arbitrary>], iteration_bounds = array<i64: 1>, scalar_prefetch = 0 : i64, scratch_operands = 0 : i64, tpu.core_type = #tpu.core_type<tc>, window_params = [{pipeline_mode = #tpu.pipeline_mode<synchronous>, transform_indices = @transform_0, window_bounds = array<i64: 512, 32>}, {pipeline_mode = #tpu.pipeline_mode<synchronous>, transform_indices = @transform_1, window_bounds = array<i64: 32, 128>}, {pipeline_mode = #tpu.pipeline_mode<synchronous>, transform_indices = @transform_2, window_bounds = array<i64: 1, 128>}, {pipeline_mode = #tpu.pipeline_mode<synchronous>, transform_indices = @transform_3, window_bounds = array<i64: 128, 128>}, {pipeline_mode = #tpu.pipeline_mode<synchronous>, transform_indices = @transform_4, window_bounds = array<i64: 1, 128>}, {pipeline_mode = #tpu.pipeline_mode<synchronous>, transform_indices = @transform_5, window_bounds = array<i64: 2, 128>}, {pipeline_mode = #tpu.pipeline_mode<synchronous>, transform_indices = @transform_6, window_bounds = array<i64: 2, 128>}]} {
    %c0 = arith.constant 0 : index
    %c0_0 = arith.constant 0 : index
    %0 = vector.load %arg1[%c0, %c0_0] : memref<512x32xbf16, #tpu.memory_space<vmem>>, vector<512x32xbf16>
    %c0_1 = arith.constant 0 : index
    %c0_2 = arith.constant 0 : index
    %1 = vector.load %arg2[%c0_1, %c0_2] : memref<32x128xbf16, #tpu.memory_space<vmem>>, vector<32x128xbf16>
    %cst = arith.constant dense<0.000000e+00> : vector<512x128xf32>
    %2 = tpu.matmul %0, %1, %cst {dimension_numbers = #tpu.dot_dimension_numbers<[1], [0], [0], [1], [0, 0, 1, 1], [], []>} : vector<512x32xbf16>, vector<32x128xbf16>, vector<512x128xf32> -> vector<512x128xf32>
    %c0_3 = arith.constant 0 : index
    %c0_4 = arith.constant 0 : index
    %3 = vector.load %arg3[%c0_3, %c0_4] : memref<1x128xf32, #tpu.memory_space<vmem>>, vector<1x128xf32>
    %4 = vector.broadcast %3 : vector<1x128xf32> to vector<512x128xf32>
    %5 = arith.addf %2, %4 : vector<512x128xf32>
    %cst_5 = arith.constant 0.000000e+00 : f32
    %6 = vector.broadcast %cst_5 : f32 to vector<512x128xf32>
    %7 = arith.maximumf %5, %6 : vector<512x128xf32>
    %8 = vector.shape_cast %7 : vector<512x128xf32> to vector<2x256x128xf32>
    %cst_6 = arith.constant dense<0.000000e+00> : vector<2x128xf32>
    %9 = vector.multi_reduction <add>, %8, %cst_6 [1] : vector<2x256x128xf32> to vector<2x128xf32>
    %cst_7 = arith.constant 3.906250e-03 : f32
    %10 = vector.broadcast %cst_7 : f32 to vector<2x128xf32>
    %11 = arith.mulf %9, %10 : vector<2x128xf32>
    %c0_8 = arith.constant 0 : index
    %c0_9 = arith.constant 0 : index
    %12 = vector.load %arg6[%c0_8, %c0_9] : memref<2x128xf32, #tpu.memory_space<vmem>>, vector<2x128xf32>
    tpu.vector_store %arg6[%c0_8, %c0_9], %11 {strides = array<i32>} : memref<2x128xf32, #tpu.memory_space<vmem>>, vector<2x128xf32>,
    %c0_10 = arith.constant 0 : index
    %c0_11 = arith.constant 0 : index
    %13 = vector.load %arg4[%c0_10, %c0_11] : memref<128x128xf32, #tpu.memory_space<vmem>>, vector<128x128xf32>
    %cst_12 = arith.constant dense<0.000000e+00> : vector<2x128xf32>
    %14 = tpu.matmul %11, %13, %cst_12 {dimension_numbers = #tpu.dot_dimension_numbers<[1], [0], [0], [1], [0, 0, 1, 1], [], []>} : vector<2x128xf32>, vector<128x128xf32>, vector<2x128xf32> -> vector<2x128xf32>
    %c0_13 = arith.constant 0 : index
    %c0_14 = arith.constant 0 : index
    %15 = vector.load %arg5[%c0_13, %c0_14] : memref<1x128xf32, #tpu.memory_space<vmem>>, vector<1x128xf32>
    %16 = vector.broadcast %15 : vector<1x128xf32> to vector<2x128xf32>
    %17 = arith.addf %14, %16 : vector<2x128xf32>
    %c0_15 = arith.constant 0 : index
    %c0_16 = arith.constant 0 : index
    %18 = vector.load %arg7[%c0_15, %c0_16] : memref<2x128xf32, #tpu.memory_space<vmem>>, vector<2x128xf32>
    tpu.vector_store %arg7[%c0_15, %c0_16], %17 {strides = array<i32>} : memref<2x128xf32, #tpu.memory_space<vmem>>, vector<2x128xf32>,
    return
  }
  func.func @transform_0(%arg0: i32) -> (i32, i32) {
    %c0_i32 = arith.constant 0 : i32
    %c0_i32_0 = arith.constant 0 : i32
    %c0_i32_1 = arith.constant 0 : i32
    return %c0_i32, %c0_i32_0 : i32, i32
  }
  func.func @transform_1(%arg0: i32) -> (i32, i32) {
    %c0_i32 = arith.constant 0 : i32
    %c0_i32_0 = arith.constant 0 : i32
    %c0_i32_1 = arith.constant 0 : i32
    return %c0_i32, %c0_i32_0 : i32, i32
  }
  func.func @transform_2(%arg0: i32) -> (i32, i32) {
    %c0_i32 = arith.constant 0 : i32
    %c0_i32_0 = arith.constant 0 : i32
    %c0_i32_1 = arith.constant 0 : i32
    return %c0_i32, %c0_i32_0 : i32, i32
  }
  func.func @transform_3(%arg0: i32) -> (i32, i32) {
    %c0_i32 = arith.constant 0 : i32
    %c0_i32_0 = arith.constant 0 : i32
    %c0_i32_1 = arith.constant 0 : i32
    return %c0_i32, %c0_i32_0 : i32, i32
  }
  func.func @transform_4(%arg0: i32) -> (i32, i32) {
    %c0_i32 = arith.constant 0 : i32
    %c0_i32_0 = arith.constant 0 : i32
    %c0_i32_1 = arith.constant 0 : i32
    return %c0_i32, %c0_i32_0 : i32, i32
  }
  func.func @transform_5(%arg0: i32) -> (i32, i32) {
    %c0_i32 = arith.constant 0 : i32
    %c0_i32_0 = arith.constant 0 : i32
    %c0_i32_1 = arith.constant 0 : i32
    return %c0_i32, %c0_i32_0 : i32, i32
  }
  func.func @transform_6(%arg0: i32) -> (i32, i32) {
    %c0_i32 = arith.constant 0 : i32
    %c0_i32_0 = arith.constant 0 : i32
    %c0_i32_1 = arith.constant 0 : i32
    return %c0_i32, %c0_i32_0 : i32, i32
  }
}

</mosaic_0001>

<llo_original>
// kernel: tpu_custom_call.1
$region0: #{tpu_custom_call.1}
  #allocation0 [shape = 'u32[]', space=smem, size = 0x4, offset = 0x4, fixed_abs, tag = 'smem constant byte address 0x4 - core index']
  #allocation1 [shape = 'u32[144,128]{1,0:T(1,128)}', space=vmem, size = 0x12000, scoped, tag = 'internal scratch']
  %s0 = inlined_call_operand.vmem [shape: bf16[512,32], index: 0, kind: input, shape index: {}]
  %s1 = inlined_call_operand.vmem [shape: bf16[32,128], index: 1, kind: input, shape index: {}]
  %s2 = inlined_call_operand.vmem [shape: f32[1,128], index: 2, kind: input, shape index: {}]
  %s3 = inlined_call_operand.vmem [shape: f32[128,128], index: 3, kind: input, shape index: {}]
  %s4 = inlined_call_operand.vmem [shape: f32[1,128], index: 4, kind: input, shape index: {}]
  %s5 = inlined_call_operand.hbm [shape: f32[2,128], index: 5, kind: output, shape index: {0}]
  %s6 = inlined_call_operand.hbm [shape: f32[2,128], index: 6, kind: output, shape index: {1}]
  %7 = xla_tuple %s5, %s6
  %s8 = sld [smem:[#allocation0]]
  $region38: #{tpu_custom_call.1} parent=0
    _
  %s10 = ssub.s32 1, %s8
  %s11 = scalar_select 0, %s10, %s8
  $region1: #{tpu_custom_call.1} parent=0
    #allocation2 [shape = 'u8[1024]{0}', space=vmem, size = 0x400, scoped, tag = 'output window, operand 0, single buffered']
    #allocation3 [shape = 's32[1]{0}', space=sflag, size = 0x4, scoped, tag = 'scoped memory for tpu_custom_call.1']
    #allocation4 [shape = 'u8[1024]{0}', space=vmem, size = 0x400, scoped, tag = 'output window, operand 1, single buffered']
    #allocation5 [shape = 's32[1]{0}', space=sflag, size = 0x4, scoped, tag = 'scoped memory for tpu_custom_call.1']
    %12 = vsyncpa [#allocation3], 0
    %13 = vsyncpa [#allocation5], 0
    // Predicated region
    $region2: #{tpu_custom_call.1} parent=1 // pred_check
      _
    $region3: #{tpu_custom_call.1} parent=1 // pred_check_branch
      %15 = sbr.rel (0) target = $region5
    $region4: #{tpu_custom_call.1} parent=1 // pred_region
      _
    $region5: #{tpu_custom_call.1} parent=1 // pred_fallthru
      _
    // Predicated region
    $region6: #{tpu_custom_call.1} parent=1 // pred_check
      _
    $region7: #{tpu_custom_call.1} parent=1 // pred_check_branch
      %17 = sbr.rel (0) target = $region9
    $region8: #{tpu_custom_call.1} parent=1 // pred_region
      _
    $region9: #{tpu_custom_call.1} parent=1 // pred_fallthru
      _
    // Predicated region
    $region10: #{tpu_custom_call.1} parent=1 // pred_check
      _
    $region11: #{tpu_custom_call.1} parent=1 // pred_check_branch
      %19 = sbr.rel (0) target = $region13
    $region12: #{tpu_custom_call.1} parent=1 // pred_region
      _
    $region13: #{tpu_custom_call.1} parent=1 // pred_fallthru
      _
    // Predicated region
    $region14: #{tpu_custom_call.1} parent=1 // pred_check
      _
    $region15: #{tpu_custom_call.1} parent=1 // pred_check_branch
      %21 = sbr.rel (0) target = $region17
    $region16: #{tpu_custom_call.1} parent=1 // pred_region
      _
    $region17: #{tpu_custom_call.1} parent=1 // pred_fallthru
      _
    // Predicated region
    $region18: #{tpu_custom_call.1} parent=1 // pred_check
      _
    $region19: #{tpu_custom_call.1} parent=1 // pred_check_branch
      %23 = sbr.rel (0) target = $region21
    $region20: #{tpu_custom_call.1} parent=1 // pred_region
      _
    $region21: #{tpu_custom_call.1} parent=1 // pred_fallthru
      _
    %v25 = vld [vmem:[%s0] sm:$0xf]
    %v26 = vld [vmem:[%s0 + $0x4] sm:$0xf]
    %v27 = vld [vmem:[%s0 + $0x8] sm:$0xf]
    %v28 = vld [vmem:[%s0 + $0xc] sm:$0xf]
    %v29 = vld [vmem:[%s0 + $0x10] sm:$0xf]
    %v30 = vld [vmem:[%s0 + $0x14] sm:$0xf]
    %v31 = vld [vmem:[%s0 + $0x18] sm:$0xf]
    %v32 = vld [vmem:[%s0 + $0x1c] sm:$0xf]
    %v33 = vld [vmem:[%s0 + $0x20] sm:$0xf]
    %v34 = vld [vmem:[%s0 + $0x24] sm:$0xf]
    %v35 = vld [vmem:[%s0 + $0x28] sm:$0xf]
    %v36 = vld [vmem:[%s0 + $0x2c] sm:$0xf]
    %v37 = vld [vmem:[%s0 + $0x30] sm:$0xf]
    %v38 = vld [vmem:[%s0 + $0x34] sm:$0xf]
    %v39 = vld [vmem:[%s0 + $0x38] sm:$0xf]
    %v40 = vld [vmem:[%s0 + $0x3c] sm:$0xf]
    %v41 = vld [vmem:[%s0 + $0x40] sm:$0xf]
    %v42 = vld [vmem:[%s0 + $0x44] sm:$0xf]
    %v43 = vld [vmem:[%s0 + $0x48] sm:$0xf]
    %v44 = vld [vmem:[%s0 + $0x4c] sm:$0xf]
    %v45 = vld [vmem:[%s0 + $0x50] sm:$0xf]
    %v46 = vld [vmem:[%s0 + $0x54] sm:$0xf]
    %v47 = vld [vmem:[%s0 + $0x58] sm:$0xf]
    %v48 = vld [vmem:[%s0 + $0x5c] sm:$0xf]
    %v49 = vld [vmem:[%s0 + $0x60] sm:$0xf]
    %v50 = vld [vmem:[%s0 + $0x64] sm:$0xf]
    %v51 = vld [vmem:[%s0 + $0x68] sm:$0xf]
    %v52 = vld [vmem:[%s0 + $0x6c] sm:$0xf]
    %v53 = vld [vmem:[%s0 + $0x70] sm:$0xf]
    %v54 = vld [vmem:[%s0 + $0x74] sm:$0xf]
    %v55 = vld [vmem:[%s0 + $0x78] sm:$0xf]
    %v56 = vld [vmem:[%s0 + $0x7c] sm:$0xf]
    %v57 = vld [vmem:[%s0 + $0x80] sm:$0xf]
    %v58 = vld [vmem:[%s0 + $0x84] sm:$0xf]
    %v59 = vld [vmem:[%s0 + $0x88] sm:$0xf]
    %v60 = vld [vmem:[%s0 + $0x8c] sm:$0xf]
    %v61 = vld [vmem:[%s0 + $0x90] sm:$0xf]
    %v62 = vld [vmem:[%s0 + $0x94] sm:$0xf]
    %v63 = vld [vmem:[%s0 + $0x98] sm:$0xf]
    %v64 = vld [vmem:[%s0 + $0x9c] sm:$0xf]
    %v65 = vld [vmem:[%s0 + $0xa0] sm:$0xf]
    %v66 = vld [vmem:[%s0 + $0xa4] sm:$0xf]
    %v67 = vld [vmem:[%s0 + $0xa8] sm:$0xf]
    %v68 = vld [vmem:[%s0 + $0xac] sm:$0xf]
    %v69 = vld [vmem:[%s0 + $0xb0] sm:$0xf]
    %v70 = vld [vmem:[%s0 + $0xb4] sm:$0xf]
    %v71 = vld [vmem:[%s0 + $0xb8] sm:$0xf]
    %v72 = vld [vmem:[%s0 + $0xbc] sm:$0xf]
    %v73 = vld [vmem:[%s0 + $0xc0] sm:$0xf]
    %v74 = vld [vmem:[%s0 + $0xc4] sm:$0xf]
    %v75 = vld [vmem:[%s0 + $0xc8] sm:$0xf]
    %v76 = vld [vmem:[%s0 + $0xcc] sm:$0xf]
    %v77 = vld [vmem:[%s0 + $0xd0] sm:$0xf]
    %v78 = vld [vmem:[%s0 + $0xd4] sm:$0xf]
    %v79 = vld [vmem:[%s0 + $0xd8] sm:$0xf]
    %v80 = vld [vmem:[%s0 + $0xdc] sm:$0xf]
    %v81 = vld [vmem:[%s0 + $0xe0] sm:$0xf]
    %v82 = vld [vmem:[%s0 + $0xe4] sm:$0xf]
    %v83 = vld [vmem:[%s0 + $0xe8] sm:$0xf]
    %v84 = vld [vmem:[%s0 + $0xec] sm:$0xf]
    %v85 = vld [vmem:[%s0 + $0xf0] sm:$0xf]
    %v86 = vld [vmem:[%s0 + $0xf4] sm:$0xf]
    %v87 = vld [vmem:[%s0 + $0xf8] sm:$0xf]
    %v88 = vld [vmem:[%s0 + $0xfc] sm:$0xf]
    %v89 = vld [vmem:[%s1] sm:$0xf]
    %v90 = vld [vmem:[%s1 + $0x4] sm:$0xf]
    %v91 = vld [vmem:[%s1 + $0x8] sm:$0xf]
    %v92 = vld [vmem:[%s1 + $0xc] sm:$0xf]
    %v93 = vld [vmem:[%s2] sm:$0x1]
    %v95 = vlaneseq
    %v96 = vshrl.u32 %v95, 7
    %v97 = vsub.s32 0, %v96
    %v98 = vrot.slane %v93, %v97
    %v164 = vunpack.c.l.b16 %v25
    %v165 = vunpack.c.l.b16 %v26
    %v166 = vunpack.c.l.b16 %v27
    %v167 = vunpack.c.l.b16 %v28
    %v168 = vunpack.c.l.b16 %v29
    %v169 = vunpack.c.l.b16 %v30
    %v170 = vunpack.c.l.b16 %v31
    %v171 = vunpack.c.l.b16 %v32
    %v172 = vunpack.c.l.b16 %v33
    %v173 = vunpack.c.l.b16 %v34
    %v174 = vunpack.c.l.b16 %v35
    %v175 = vunpack.c.l.b16 %v36
    %v176 = vunpack.c.l.b16 %v37
    %v177 = vunpack.c.l.b16 %v38
    %v178 = vunpack.c.l.b16 %v39
    %v179 = vunpack.c.l.b16 %v40
    %v180 = vunpack.c.l.b16 %v41
    %v181 = vunpack.c.l.b16 %v42
    %v182 = vunpack.c.l.b16 %v43
    %v183 = vunpack.c.l.b16 %v44
    %v184 = vunpack.c.l.b16 %v45
    %v185 = vunpack.c.l.b16 %v46
    %v186 = vunpack.c.l.b16 %v47
    %v187 = vunpack.c.l.b16 %v48
    %v188 = vunpack.c.l.b16 %v49
    %v189 = vunpack.c.l.b16 %v50
    %v190 = vunpack.c.l.b16 %v51
    %v191 = vunpack.c.l.b16 %v52
    %v192 = vunpack.c.l.b16 %v53
    %v193 = vunpack.c.l.b16 %v54
    %v194 = vunpack.c.l.b16 %v55
    %v195 = vunpack.c.l.b16 %v56
    %v196 = vunpack.c.l.b16 %v57
    %v197 = vunpack.c.l.b16 %v58
    %v198 = vunpack.c.l.b16 %v59
    %v199 = vunpack.c.l.b16 %v60
    %v200 = vunpack.c.l.b16 %v61
    %v201 = vunpack.c.l.b16 %v62
    %v202 = vunpack.c.l.b16 %v63
    %v203 = vunpack.c.l.b16 %v64
    %v204 = vunpack.c.l.b16 %v65
    %v205 = vunpack.c.l.b16 %v66
    %v206 = vunpack.c.l.b16 %v67
    %v207 = vunpack.c.l.b16 %v68
    %v208 = vunpack.c.l.b16 %v69
    %v209 = vunpack.c.l.b16 %v70
    %v210 = vunpack.c.l.b16 %v71
    %v211 = vunpack.c.l.b16 %v72
    %v212 = vunpack.c.l.b16 %v73
    %v213 = vunpack.c.l.b16 %v74
    %v214 = vunpack.c.l.b16 %v75
    %v215 = vunpack.c.l.b16 %v76
    %v216 = vunpack.c.l.b16 %v77
    %v217 = vunpack.c.l.b16 %v78
    %v218 = vunpack.c.l.b16 %v79
    %v219 = vunpack.c.l.b16 %v80
    %v220 = vunpack.c.l.b16 %v81
    %v221 = vunpack.c.l.b16 %v82
    %v222 = vunpack.c.l.b16 %v83
    %v223 = vunpack.c.l.b16 %v84
    %v224 = vunpack.c.l.b16 %v85
    %v225 = vunpack.c.l.b16 %v86
    %v226 = vunpack.c.l.b16 %v87
    %v227 = vunpack.c.l.b16 %v88
    %v228 = vpack.c.b16 %v165, %v164
    %v229 = vpack.c.b16 %v167, %v166
    %v230 = vpack.c.b16 %v169, %v168
    %v231 = vpack.c.b16 %v171, %v170
    %v232 = vpack.c.b16 %v173, %v172
    %v233 = vpack.c.b16 %v175, %v174
    %v234 = vpack.c.b16 %v177, %v176
    %v235 = vpack.c.b16 %v179, %v178
    %v236 = vpack.c.b16 %v181, %v180
    %v237 = vpack.c.b16 %v183, %v182
    %v238 = vpack.c.b16 %v185, %v184
    %v239 = vpack.c.b16 %v187, %v186
    %v240 = vpack.c.b16 %v189, %v188
    %v241 = vpack.c.b16 %v191, %v190
    %v242 = vpack.c.b16 %v193, %v192
    %v243 = vpack.c.b16 %v195, %v194
    %v244 = vpack.c.b16 %v197, %v196
    %v245 = vpack.c.b16 %v199, %v198
    %v246 = vpack.c.b16 %v201, %v200
    %v247 = vpack.c.b16 %v203, %v202
    %v248 = vpack.c.b16 %v205, %v204
    %v249 = vpack.c.b16 %v207, %v206
    %v250 = vpack.c.b16 %v209, %v208
    %v251 = vpack.c.b16 %v211, %v210
    %v252 = vpack.c.b16 %v213, %v212
    %v253 = vpack.c.b16 %v215, %v214
    %v254 = vpack.c.b16 %v217, %v216
    %v255 = vpack.c.b16 %v219, %v218
    %v256 = vpack.c.b16 %v221, %v220
    %v257 = vpack.c.b16 %v223, %v222
    %v258 = vpack.c.b16 %v225, %v224
    %v259 = vpack.c.b16 %v227, %v226
    %v264 = vunpack.c.l.b16 %v89
    %v265 = vunpack.c.l.b16 %v90
    %v266 = vunpack.c.l.b16 %v91
    %v267 = vunpack.c.l.b16 %v92
    %v268 = vpack.c.b16 %v265, %v264
    %v269 = vpack.c.b16 %v267, %v266
    %vm272 = vcmask 261120
    %v274 = vsel %vm272, %v228, 0
    %v277 = vsel %vm272, %v229, 0
    %v280 = vsel %vm272, %v230, 0
    %v283 = vsel %vm272, %v231, 0
    %v286 = vsel %vm272, %v232, 0
    %v289 = vsel %vm272, %v233, 0
    %v292 = vsel %vm272, %v234, 0
    %v295 = vsel %vm272, %v235, 0
    %v298 = vsel %vm272, %v236, 0
    %v301 = vsel %vm272, %v237, 0
    %v304 = vsel %vm272, %v238, 0
    %v307 = vsel %vm272, %v239, 0
    %v310 = vsel %vm272, %v240, 0
    %v313 = vsel %vm272, %v241, 0
    %v316 = vsel %vm272, %v242, 0
    %v319 = vsel %vm272, %v243, 0
    %v322 = vsel %vm272, %v244, 0
    %v325 = vsel %vm272, %v245, 0
    %v328 = vsel %vm272, %v246, 0
    %v331 = vsel %vm272, %v247, 0
    %v334 = vsel %vm272, %v248, 0
    %v337 = vsel %vm272, %v249, 0
    %v340 = vsel %vm272, %v250, 0
    %v343 = vsel %vm272, %v251, 0
    %v346 = vsel %vm272, %v252, 0
    %v349 = vsel %vm272, %v253, 0
    %v352 = vsel %vm272, %v254, 0
    %v355 = vsel %vm272, %v255, 0
    %v358 = vsel %vm272, %v256, 0
    %v361 = vsel %vm272, %v257, 0
    %v364 = vsel %vm272, %v258, 0
    %v367 = vsel %vm272, %v259, 0
    %369 = vmatprep.subr.bf16.mxu0 0
    %370 = vmatpush1.bf16.msra.mxu0 %v268
    %371 = vmatprep.subr.bf16.mxu0 0
    %372 = vmatpush1.bf16.msra.mxu0 %v269
    %373 = vmatprep.subr.bf16.mxu0 0
    %374 = vmatpush1.bf16.msra.mxu0 0
    %375 = vmatprep.subr.bf16.mxu0 0
    %376 = vmatpush1.bf16.msra.mxu0 0
    %377 = vmatprep.subr.bf16.mxu0 0
    %378 = vmatpush1.bf16.msra.mxu0 0
    %379 = vmatprep.subr.bf16.mxu0 0
    %380 = vmatpush1.bf16.msra.mxu0 0
    %381 = vmatprep.subr.bf16.mxu0 0
    %382 = vmatpush1.bf16.msra.mxu0 0
    %383 = vmatprep.subr.bf16.mxu0 0
    %384 = vmatpush1.bf16.msra.mxu0 0
    %385 = vmatprep.subr.bf16.mxu0 0
    %386 = vmatpush1.bf16.msra.mxu0 0
    %387 = vmatprep.subr.bf16.mxu0 0
    %388 = vmatpush1.bf16.msra.mxu0 0
    %389 = vmatprep.subr.bf16.mxu0 0
    %390 = vmatpush1.bf16.msra.mxu0 0
    %391 = vmatprep.subr.bf16.mxu0 0
    %392 = vmatpush1.bf16.msra.mxu0 0
    %393 = vmatprep.subr.bf16.mxu0 0
    %394 = vmatpush1.bf16.msra.mxu0 0
    %395 = vmatprep.subr.bf16.mxu0 0
    %396 = vmatpush1.bf16.msra.mxu0 0
    %397 = vmatprep.subr.bf16.mxu0 0
    %398 = vmatpush1.bf16.msra.mxu0 0
    %399 = vmatprep.subr.bf16.mxu0 0
    %400 = vmatpush1.bf16.msra.mxu0 0
    %401 = vmatprep.mubr.bf16.mxu0 0
    %402 = vmatmul.mubr.bf16.gmra.mrb[0].mxu0 %v274
    %v403 = vpop.f32.mrb[0].mxu0
    %v404 = vadd.f32 %v98, %v403
    %v405 = vpop.f32.mrb[0].mxu0
    %v406 = vpop.f32.mrb[0].mxu0
    %v407 = vadd.f32 %v98, %v406
    %v408 = vpop.f32.mrb[0].mxu0
    %409 = vmatprep.mubr.bf16.mxu0 0
    %410 = vmatmul.mubr.bf16.gmra.mrb[0].mxu0 %v277
    %v411 = vpop.f32.mrb[0].mxu0
    %v412 = vadd.f32 %v98, %v411
    %v413 = vpop.f32.mrb[0].mxu0
    %v414 = vpop.f32.mrb[0].mxu0
    %v415 = vadd.f32 %v98, %v414
    %v416 = vpop.f32.mrb[0].mxu0
    %417 = vmatprep.mubr.bf16.mxu0 0
    %418 = vmatmul.mubr.bf16.gmra.mrb[0].mxu0 %v280
    %v419 = vpop.f32.mrb[0].mxu0
    %v420 = vadd.f32 %v98, %v419
    %v421 = vpop.f32.mrb[0].mxu0
    %v422 = vpop.f32.mrb[0].mxu0
    %v423 = vadd.f32 %v98, %v422
    %v424 = vpop.f32.mrb[0].mxu0
    %425 = vmatprep.mubr.bf16.mxu0 0
    %426 = vmatmul.mubr.bf16.gmra.mrb[0].mxu0 %v283
    %v427 = vpop.f32.mrb[0].mxu0
    %v428 = vadd.f32 %v98, %v427
    %v429 = vpop.f32.mrb[0].mxu0
    %v430 = vpop.f32.mrb[0].mxu0
    %v431 = vadd.f32 %v98, %v430
    %v432 = vpop.f32.mrb[0].mxu0
    %433 = vmatprep.mubr.bf16.mxu0 0
    %434 = vmatmul.mubr.bf16.gmra.mrb[0].mxu0 %v286
    %v435 = vpop.f32.mrb[0].mxu0
    %v436 = vadd.f32 %v98, %v435
    %v437 = vpop.f32.mrb[0].mxu0
    %v438 = vpop.f32.mrb[0].mxu0
    %v439 = vadd.f32 %v98, %v438
    %v440 = vpop.f32.mrb[0].mxu0
    %441 = vmatprep.mubr.bf16.mxu0 0
    %442 = vmatmul.mubr.bf16.gmra.mrb[0].mxu0 %v289
    %v443 = vpop.f32.mrb[0].mxu0
    %v444 = vadd.f32 %v98, %v443
    %v445 = vpop.f32.mrb[0].mxu0
    %v446 = vpop.f32.mrb[0].mxu0
    %v447 = vadd.f32 %v98, %v446
    %v448 = vpop.f32.mrb[0].mxu0
    %449 = vmatprep.mubr.bf16.mxu0 0
    %450 = vmatmul.mubr.bf16.gmra.mrb[0].mxu0 %v292
    %v451 = vpop.f32.mrb[0].mxu0
    %v452 = vadd.f32 %v98, %v451
    %v453 = vpop.f32.mrb[0].mxu0
    %v454 = vpop.f32.mrb[0].mxu0
    %v455 = vadd.f32 %v98, %v454
    %v456 = vpop.f32.mrb[0].mxu0
    %457 = vmatprep.mubr.bf16.mxu0 0
    %458 = vmatmul.mubr.bf16.gmra.mrb[0].mxu0 %v295
    %v459 = vpop.f32.mrb[0].mxu0
    %v460 = vadd.f32 %v98, %v459
    %v461 = vpop.f32.mrb[0].mxu0
    %v462 = vpop.f32.mrb[0].mxu0
    %v463 = vadd.f32 %v98, %v462
    %v464 = vpop.f32.mrb[0].mxu0
    %465 = vmatprep.mubr.bf16.mxu0 0
    %466 = vmatmul.mubr.bf16.gmra.mrb[0].mxu0 %v298
    %v467 = vpop.f32.mrb[0].mxu0
    %v468 = vadd.f32 %v98, %v467
    %v469 = vpop.f32.mrb[0].mxu0
    %v470 = vpop.f32.mrb[0].mxu0
    %v471 = vadd.f32 %v98, %v470
    %v472 = vpop.f32.mrb[0].mxu0
    %473 = vmatprep.mubr.bf16.mxu0 0
    %474 = vmatmul.mubr.bf16.gmra.mrb[0].mxu0 %v301
    %v475 = vpop.f32.mrb[0].mxu0
    %v476 = vadd.f32 %v98, %v475
    %v477 = vpop.f32.mrb[0].mxu0
    %v478 = vpop.f32.mrb[0].mxu0
    %v479 = vadd.f32 %v98, %v478
    %v480 = vpop.f32.mrb[0].mxu0
    %481 = vmatprep.mubr.bf16.mxu0 0
    %482 = vmatmul.mubr.bf16.gmra.mrb[0].mxu0 %v304
    %v483 = vpop.f32.mrb[0].mxu0
    %v484 = vadd.f32 %v98, %v483
    %v485 = vpop.f32.mrb[0].mxu0
    %v486 = vpop.f32.mrb[0].mxu0
    %v487 = vadd.f32 %v98, %v486
    %v488 = vpop.f32.mrb[0].mxu0
    %489 = vmatprep.mubr.bf16.mxu0 0
    %490 = vmatmul.mubr.bf16.gmra.mrb[0].mxu0 %v307
    %v491 = vpop.f32.mrb[0].mxu0
    %v492 = vadd.f32 %v98, %v491
    %v493 = vpop.f32.mrb[0].mxu0
    %v494 = vpop.f32.mrb[0].mxu0
    %v495 = vadd.f32 %v98, %v494
    %v496 = vpop.f32.mrb[0].mxu0
    %497 = vmatprep.mubr.bf16.mxu0 0
    %498 = vmatmul.mubr.bf16.gmra.mrb[0].mxu0 %v310
    %v499 = vpop.f32.mrb[0].mxu0
    %v500 = vadd.f32 %v98, %v499
    %v501 = vpop.f32.mrb[0].mxu0
    %v502 = vpop.f32.mrb[0].mxu0
    %v503 = vadd.f32 %v98, %v502
    %v504 = vpop.f32.mrb[0].mxu0
    %505 = vmatprep.mubr.bf16.mxu0 0
    %506 = vmatmul.mubr.bf16.gmra.mrb[0].mxu0 %v313
    %v507 = vpop.f32.mrb[0].mxu0
    %v508 = vadd.f32 %v98, %v507
    %v509 = vpop.f32.mrb[0].mxu0
    %v510 = vpop.f32.mrb[0].mxu0
    %v511 = vadd.f32 %v98, %v510
    %v512 = vpop.f32.mrb[0].mxu0
    %513 = vmatprep.mubr.bf16.mxu0 0
    %514 = vmatmul.mubr.bf16.gmra.mrb[0].mxu0 %v316
    %v515 = vpop.f32.mrb[0].mxu0
    %v516 = vadd.f32 %v98, %v515
    %v517 = vpop.f32.mrb[0].mxu0
    %v518 = vpop.f32.mrb[0].mxu0
    %v519 = vadd.f32 %v98, %v518
    %v520 = vpop.f32.mrb[0].mxu0
    %521 = vmatprep.mubr.bf16.mxu0 0
    %522 = vmatmul.mubr.bf16.gmra.mrb[0].mxu0 %v319
    %v523 = vpop.f32.mrb[0].mxu0
    %v524 = vadd.f32 %v98, %v523
    %v525 = vpop.f32.mrb[0].mxu0
    %v526 = vpop.f32.mrb[0].mxu0
    %v527 = vadd.f32 %v98, %v526
    %v528 = vpop.f32.mrb[0].mxu0
    %529 = vmatprep.mubr.bf16.mxu0 0
    %530 = vmatmul.mubr.bf16.gmra.mrb[0].mxu0 %v322
    %v531 = vpop.f32.mrb[0].mxu0
    %v532 = vadd.f32 %v98, %v531
    %v533 = vpop.f32.mrb[0].mxu0
    %v534 = vpop.f32.mrb[0].mxu0
    %v535 = vadd.f32 %v98, %v534
    %v536 = vpop.f32.mrb[0].mxu0
    %537 = vmatprep.mubr.bf16.mxu0 0
    %538 = vmatmul.mubr.bf16.gmra.mrb[0].mxu0 %v325
    %v539 = vpop.f32.mrb[0].mxu0
    %v540 = vadd.f32 %v98, %v539
    %v541 = vpop.f32.mrb[0].mxu0
    %v542 = vpop.f32.mrb[0].mxu0
    %v543 = vadd.f32 %v98, %v542
    %v544 = vpop.f32.mrb[0].mxu0
    %545 = vmatprep.mubr.bf16.mxu0 0
    %546 = vmatmul.mubr.bf16.gmra.mrb[0].mxu0 %v328
    %v547 = vpop.f32.mrb[0].mxu0
    %v548 = vadd.f32 %v98, %v547
    %v549 = vpop.f32.mrb[0].mxu0
    %v550 = vpop.f32.mrb[0].mxu0
    %v551 = vadd.f32 %v98, %v550
    %v552 = vpop.f32.mrb[0].mxu0
    %553 = vmatprep.mubr.bf16.mxu0 0
    %554 = vmatmul.mubr.bf16.gmra.mrb[0].mxu0 %v331
    %v555 = vpop.f32.mrb[0].mxu0
    %v556 = vadd.f32 %v98, %v555
    %v557 = vpop.f32.mrb[0].mxu0
    %v558 = vpop.f32.mrb[0].mxu0
    %v559 = vadd.f32 %v98, %v558
    %v560 = vpop.f32.mrb[0].mxu0
    %561 = vmatprep.mubr.bf16.mxu0 0
    %562 = vmatmul.mubr.bf16.gmra.mrb[0].mxu0 %v334
    %v563 = vpop.f32.mrb[0].mxu0
    %v564 = vadd.f32 %v98, %v563
    %v565 = vpop.f32.mrb[0].mxu0
    %v566 = vpop.f32.mrb[0].mxu0
    %v567 = vadd.f32 %v98, %v566
    %v568 = vpop.f32.mrb[0].mxu0
    %569 = vmatprep.mubr.bf16.mxu0 0
    %570 = vmatmul.mubr.bf16.gmra.mrb[0].mxu0 %v337
    %v571 = vpop.f32.mrb[0].mxu0
    %v572 = vadd.f32 %v98, %v571
    %v573 = vpop.f32.mrb[0].mxu0
    %v574 = vpop.f32.mrb[0].mxu0
    %v575 = vadd.f32 %v98, %v574
    %v576 = vpop.f32.mrb[0].mxu0
    %577 = vmatprep.mubr.bf16.mxu0 0
    %578 = vmatmul.mubr.bf16.gmra.mrb[0].mxu0 %v340
    %v579 = vpop.f32.mrb[0].mxu0
    %v580 = vadd.f32 %v98, %v579
    %v581 = vpop.f32.mrb[0].mxu0
    %v582 = vpop.f32.mrb[0].mxu0
    %v583 = vadd.f32 %v98, %v582
    %v584 = vpop.f32.mrb[0].mxu0
    %585 = vmatprep.mubr.bf16.mxu0 0
    %586 = vmatmul.mubr.bf16.gmra.mrb[0].mxu0 %v343
    %v587 = vpop.f32.mrb[0].mxu0
    %v588 = vadd.f32 %v98, %v587
    %v589 = vpop.f32.mrb[0].mxu0
    %v590 = vpop.f32.mrb[0].mxu0
    %v591 = vadd.f32 %v98, %v590
    %v592 = vpop.f32.mrb[0].mxu0
    %593 = vmatprep.mubr.bf16.mxu0 0
    %594 = vmatmul.mubr.bf16.gmra.mrb[0].mxu0 %v346
    %v595 = vpop.f32.mrb[0].mxu0
    %v596 = vadd.f32 %v98, %v595
    %v597 = vpop.f32.mrb[0].mxu0
    %v598 = vpop.f32.mrb[0].mxu0
    %v599 = vadd.f32 %v98, %v598
    %v600 = vpop.f32.mrb[0].mxu0
    %601 = vmatprep.mubr.bf16.mxu0 0
    %602 = vmatmul.mubr.bf16.gmra.mrb[0].mxu0 %v349
    %v603 = vpop.f32.mrb[0].mxu0
    %v604 = vadd.f32 %v98, %v603
    %v605 = vpop.f32.mrb[0].mxu0
    %v606 = vpop.f32.mrb[0].mxu0
    %v607 = vadd.f32 %v98, %v606
    %v608 = vpop.f32.mrb[0].mxu0
    %609 = vmatprep.mubr.bf16.mxu0 0
    %610 = vmatmul.mubr.bf16.gmra.mrb[0].mxu0 %v352
    %v611 = vpop.f32.mrb[0].mxu0
    %v612 = vadd.f32 %v98, %v611
    %v613 = vpop.f32.mrb[0].mxu0
    %v614 = vpop.f32.mrb[0].mxu0
    %v615 = vadd.f32 %v98, %v614
    %v616 = vpop.f32.mrb[0].mxu0
    %617 = vmatprep.mubr.bf16.mxu0 0
    %618 = vmatmul.mubr.bf16.gmra.mrb[0].mxu0 %v355
    %v619 = vpop.f32.mrb[0].mxu0
    %v620 = vadd.f32 %v98, %v619
    %v621 = vpop.f32.mrb[0].mxu0
    %v622 = vpop.f32.mrb[0].mxu0
    %v623 = vadd.f32 %v98, %v622
    %v624 = vpop.f32.mrb[0].mxu0
    %625 = vmatprep.mubr.bf16.mxu0 0
    %626 = vmatmul.mubr.bf16.gmra.mrb[0].mxu0 %v358
    %v627 = vpop.f32.mrb[0].mxu0
    %v628 = vadd.f32 %v98, %v627
    %v629 = vpop.f32.mrb[0].mxu0
    %v630 = vpop.f32.mrb[0].mxu0
    %v631 = vadd.f32 %v98, %v630
    %v632 = vpop.f32.mrb[0].mxu0
    %633 = vmatprep.mubr.bf16.mxu0 0
    %634 = vmatmul.mubr.bf16.gmra.mrb[0].mxu0 %v361
    %v635 = vpop.f32.mrb[0].mxu0
    %v636 = vadd.f32 %v98, %v635
    %v637 = vpop.f32.mrb[0].mxu0
    %v638 = vpop.f32.mrb[0].mxu0
    %v639 = vadd.f32 %v98, %v638
    %v640 = vpop.f32.mrb[0].mxu0
    %641 = vmatprep.mubr.bf16.mxu0 0
    %642 = vmatmul.mubr.bf16.gmra.mrb[0].mxu0 %v364
    %v643 = vpop.f32.mrb[0].mxu0
    %v644 = vadd.f32 %v98, %v643
    %v645 = vpop.f32.mrb[0].mxu0
    %v646 = vpop.f32.mrb[0].mxu0
    %v647 = vadd.f32 %v98, %v646
    %v648 = vpop.f32.mrb[0].mxu0
    %649 = vmatprep.mubr.bf16.mxu0 0
    %650 = vmatmul.mubr.bf16.gmra.mrb[0].mxu0 %v367
    %v651 = vpop.f32.mrb[0].mxu0
    %v652 = vadd.f32 %v98, %v651
    %v653 = vpop.f32.mrb[0].mxu0
    %v654 = vpop.f32.mrb[0].mxu0
    %v655 = vadd.f32 %v98, %v654
    %v656 = vpop.f32.mrb[0].mxu0
    %657 = vdwg.mxu0
    %v658 = vmax.f32 %v404, 0.0
    %v659 = vmax.f32 %v407, 0.0
    %v660 = vmax.f32 %v412, 0.0
    %v661 = vmax.f32 %v415, 0.0
    %v662 = vmax.f32 %v420, 0.0
    %v663 = vmax.f32 %v423, 0.0
    %v664 = vmax.f32 %v428, 0.0
    %v665 = vmax.f32 %v431, 0.0
    %v666 = vmax.f32 %v436, 0.0
    %v667 = vmax.f32 %v439, 0.0
    %v668 = vmax.f32 %v444, 0.0
    %v669 = vmax.f32 %v447, 0.0
    %v670 = vmax.f32 %v452, 0.0
    %v671 = vmax.f32 %v455, 0.0
    %v672 = vmax.f32 %v460, 0.0
    %v673 = vmax.f32 %v463, 0.0
    %v674 = vmax.f32 %v468, 0.0
    %v675 = vmax.f32 %v471, 0.0
    %v676 = vmax.f32 %v476, 0.0
    %v677 = vmax.f32 %v479, 0.0
    %v678 = vmax.f32 %v484, 0.0
    %v679 = vmax.f32 %v487, 0.0
    %v680 = vmax.f32 %v492, 0.0
    %v681 = vmax.f32 %v495, 0.0
    %v682 = vmax.f32 %v500, 0.0
    %v683 = vmax.f32 %v503, 0.0
    %v684 = vmax.f32 %v508, 0.0
    %v685 = vmax.f32 %v511, 0.0
    %v686 = vmax.f32 %v516, 0.0
    %v687 = vmax.f32 %v519, 0.0
    %v688 = vmax.f32 %v524, 0.0
    %v689 = vmax.f32 %v527, 0.0
    %v690 = vmax.f32 %v532, 0.0
    %v691 = vmax.f32 %v535, 0.0
    %v692 = vmax.f32 %v540, 0.0
    %v693 = vmax.f32 %v543, 0.0
    %v694 = vmax.f32 %v548, 0.0
    %v695 = vmax.f32 %v551, 0.0
    %v696 = vmax.f32 %v556, 0.0
    %v697 = vmax.f32 %v559, 0.0
    %v698 = vmax.f32 %v564, 0.0
    %v699 = vmax.f32 %v567, 0.0
    %v700 = vmax.f32 %v572, 0.0
    %v701 = vmax.f32 %v575, 0.0
    %v702 = vmax.f32 %v580, 0.0
    %v703 = vmax.f32 %v583, 0.0
    %v704 = vmax.f32 %v588, 0.0
    %v705 = vmax.f32 %v591, 0.0
    %v706 = vmax.f32 %v596, 0.0
    %v707 = vmax.f32 %v599, 0.0
    %v708 = vmax.f32 %v604, 0.0
    %v709 = vmax.f32 %v607, 0.0
    %v710 = vmax.f32 %v612, 0.0
    %v711 = vmax.f32 %v615, 0.0
    %v712 = vmax.f32 %v620, 0.0
    %v713 = vmax.f32 %v623, 0.0
    %v714 = vmax.f32 %v628, 0.0
    %v715 = vmax.f32 %v631, 0.0
    %v716 = vmax.f32 %v636, 0.0
    %v717 = vmax.f32 %v639, 0.0
    %v718 = vmax.f32 %v644, 0.0
    %v719 = vmax.f32 %v647, 0.0
    %v720 = vmax.f32 %v652, 0.0
    %v721 = vmax.f32 %v655, 0.0
    %v722 = vadd.f32 %v658, %v659
    %v723 = vadd.f32 %v722, %v660
    %v724 = vadd.f32 %v723, %v661
    %v725 = vadd.f32 %v724, %v662
    %v726 = vadd.f32 %v725, %v663
    %v727 = vadd.f32 %v726, %v664
    %v728 = vadd.f32 %v727, %v665
    %v729 = vadd.f32 %v728, %v666
    %v730 = vadd.f32 %v729, %v667
    %v731 = vadd.f32 %v730, %v668
    %v732 = vadd.f32 %v731, %v669
    %v733 = vadd.f32 %v732, %v670
    %v734 = vadd.f32 %v733, %v671
    %v735 = vadd.f32 %v734, %v672
    %v736 = vadd.f32 %v735, %v673
    %v737 = vadd.f32 %v736, %v674
    %v738 = vadd.f32 %v737, %v675
    %v739 = vadd.f32 %v738, %v676
    %v740 = vadd.f32 %v739, %v677
    %v741 = vadd.f32 %v740, %v678
    %v742 = vadd.f32 %v741, %v679
    %v743 = vadd.f32 %v742, %v680
    %v744 = vadd.f32 %v743, %v681
    %v745 = vadd.f32 %v744, %v682
    %v746 = vadd.f32 %v745, %v683
    %v747 = vadd.f32 %v746, %v684
    %v748 = vadd.f32 %v747, %v685
    %v749 = vadd.f32 %v748, %v686
    %v750 = vadd.f32 %v749, %v687
    %v751 = vadd.f32 %v750, %v688
    %v752 = vadd.f32 %v751, %v689
    %v753 = vrot.slane %v752, 4
    %v754 = vadd.f32 %v752, %v753
    %v755 = vrot.slane %v754, 2
    %v756 = vadd.f32 %v754, %v755
    %v757 = vrot.slane %v756, 1
    %v758 = vadd.f32 %v756, %v757
    %v759 = vadd.f32 %v690, %v691
    %v760 = vadd.f32 %v759, %v692
    %v761 = vadd.f32 %v760, %v693
    %v762 = vadd.f32 %v761, %v694
    %v763 = vadd.f32 %v762, %v695
    %v764 = vadd.f32 %v763, %v696
    %v765 = vadd.f32 %v764, %v697
    %v766 = vadd.f32 %v765, %v698
    %v767 = vadd.f32 %v766, %v699
    %v768 = vadd.f32 %v767, %v700
    %v769 = vadd.f32 %v768, %v701
    %v770 = vadd.f32 %v769, %v702
    %v771 = vadd.f32 %v770, %v703
    %v772 = vadd.f32 %v771, %v704
    %v773 = vadd.f32 %v772, %v705
    %v774 = vadd.f32 %v773, %v706
    %v775 = vadd.f32 %v774, %v707
    %v776 = vadd.f32 %v775, %v708
    %v777 = vadd.f32 %v776, %v709
    %v778 = vadd.f32 %v777, %v710
    %v779 = vadd.f32 %v778, %v711
    %v780 = vadd.f32 %v779, %v712
    %v781 = vadd.f32 %v780, %v713
    %v782 = vadd.f32 %v781, %v714
    %v783 = vadd.f32 %v782, %v715
    %v784 = vadd.f32 %v783, %v716
    %v785 = vadd.f32 %v784, %v717
    %v786 = vadd.f32 %v785, %v718
    %v787 = vadd.f32 %v786, %v719
    %v788 = vadd.f32 %v787, %v720
    %v789 = vadd.f32 %v788, %v721
    %v790 = vrot.slane %v789, 4
    %v791 = vadd.f32 %v789, %v790
    %v792 = vrot.slane %v791, 2
    %v793 = vadd.f32 %v791, %v792
    %v794 = vrot.slane %v793, 1
    %v795 = vadd.f32 %v793, %v794
    %v796 = vmul.f32 %v758, 0.00390625
    %v797 = vmul.f32 %v795, 0.00390625
    %vm800 = vcmask 1041409
    %v801 = vsel %vm800, %v797, %v796
    %803 = vst [vmem:[#allocation2] sm:$0x3] %v801
    %v804 = vld [vmem:[%s3] sm:$0xff]
    %v805 = vld [vmem:[%s3 + $0x8] sm:$0xff]
    %v806 = vld [vmem:[%s3 + $0x10] sm:$0xff]
    %v807 = vld [vmem:[%s3 + $0x18] sm:$0xff]
    %v808 = vld [vmem:[%s3 + $0x20] sm:$0xff]
    %v809 = vld [vmem:[%s3 + $0x28] sm:$0xff]
    %v810 = vld [vmem:[%s3 + $0x30] sm:$0xff]
    %v811 = vld [vmem:[%s3 + $0x38] sm:$0xff]
    %v812 = vld [vmem:[%s3 + $0x40] sm:$0xff]
    %v813 = vld [vmem:[%s3 + $0x48] sm:$0xff]
    %v814 = vld [vmem:[%s3 + $0x50] sm:$0xff]
    %v815 = vld [vmem:[%s3 + $0x58] sm:$0xff]
    %v816 = vld [vmem:[%s3 + $0x60] sm:$0xff]
    %v817 = vld [vmem:[%s3 + $0x68] sm:$0xff]
    %v818 = vld [vmem:[%s3 + $0x70] sm:$0xff]
    %v819 = vld [vmem:[%s3 + $0x78] sm:$0xff]
    %v820 = vld [vmem:[%s4] sm:$0x1]
    %v822 = vlaneseq
    %v823 = vshrl.u32 %v822, 7
    %v824 = vsub.s32 0, %v823
    %v825 = vrot.slane %v820, %v824
    %827 = vmatprep.subr.mxu0 0.0
    %828 = vmatpush1.msra.mxu0 %v804
    %829 = vmatprep.subr.mxu0 0.0
    %830 = vmatpush1.msra.mxu0 %v805
    %831 = vmatprep.subr.mxu0 0.0
    %832 = vmatpush1.msra.mxu0 %v806
    %833 = vmatprep.subr.mxu0 0.0
    %834 = vmatpush1.msra.mxu0 %v807
    %835 = vmatprep.subr.mxu0 0.0
    %836 = vmatpush1.msra.mxu0 %v808
    %837 = vmatprep.subr.mxu0 0.0
    %838 = vmatpush1.msra.mxu0 %v809
    %839 = vmatprep.subr.mxu0 0.0
    %840 = vmatpush1.msra.mxu0 %v810
    %841 = vmatprep.subr.mxu0 0.0
    %842 = vmatpush1.msra.mxu0 %v811
    %843 = vmatprep.subr.mxu0 0.0
    %844 = vmatpush1.msra.mxu0 %v812
    %845 = vmatprep.subr.mxu0 0.0
    %846 = vmatpush1.msra.mxu0 %v813
    %847 = vmatprep.subr.mxu0 0.0
    %848 = vmatpush1.msra.mxu0 %v814
    %849 = vmatprep.subr.mxu0 0.0
    %850 = vmatpush1.msra.mxu0 %v815
    %851 = vmatprep.subr.mxu0 0.0
    %852 = vmatpush1.msra.mxu0 %v816
    %853 = vmatprep.subr.mxu0 0.0
    %854 = vmatpush1.msra.mxu0 %v817
    %855 = vmatprep.subr.mxu0 0.0
    %856 = vmatpush1.msra.mxu0 %v818
    %857 = vmatprep.subr.mxu0 0.0
    %858 = vmatpush1.msra.mxu0 %v819
    %859 = vmatprep.subr.mxu0 0.0
    %860 = vmatpush1.msra.mxu0 0.0
    %861 = vmatprep.subr.mxu0 0.0
    %862 = vmatpush1.msra.mxu0 0.0
    %863 = vmatprep.subr.mxu0 0.0
    %864 = vmatpush1.msra.mxu0 0.0
    %865 = vmatprep.subr.mxu0 0.0
    %866 = vmatpush1.msra.mxu0 0.0
    %867 = vmatprep.subr.mxu0 0.0
    %868 = vmatpush1.msra.mxu0 0.0
    %869 = vmatprep.subr.mxu0 0.0
    %870 = vmatpush1.msra.mxu0 0.0
    %871 = vmatprep.subr.mxu0 0.0
    %872 = vmatpush1.msra.mxu0 0.0
    %873 = vmatprep.subr.mxu0 0.0
    %874 = vmatpush1.msra.mxu0 0.0
    %875 = vmatprep.subr.mxu0 0.0
    %876 = vmatpush1.msra.mxu0 0.0
    %877 = vmatprep.subr.mxu0 0.0
    %878 = vmatpush1.msra.mxu0 0.0
    %879 = vmatprep.subr.mxu0 0.0
    %880 = vmatpush1.msra.mxu0 0.0
    %881 = vmatprep.subr.mxu0 0.0
    %882 = vmatpush1.msra.mxu0 0.0
    %883 = vmatprep.subr.mxu0 0.0
    %884 = vmatpush1.msra.mxu0 0.0
    %885 = vmatprep.subr.mxu0 0.0
    %886 = vmatpush1.msra.mxu0 0.0
    %887 = vmatprep.subr.mxu0 0.0
    %888 = vmatpush1.msra.mxu0 0.0
    %889 = vmatprep.subr.mxu0 0.0
    %890 = vmatpush1.msra.mxu0 0.0
    %891 = vmatprep.mubr.f32.mxu0 0.0
    %892 = vmatmul.mubr.f32.gmra.mrb[0].mxu0 %v801
    %v893 = vpop.f32.mrb[0].mxu0
    %v894 = vadd.f32 %v825, %v893
    %v895 = vpop.f32.mrb[0].mxu0
    %896 = vdwg.mxu0
    %897 = vst [vmem:[#allocation4] sm:$0x3] %v894
    // Predicated region
    $region22: #{tpu_custom_call.1} parent=1 // pred_check
      _
    $region23: #{tpu_custom_call.1} parent=1 // pred_check_branch
      %899 = sbr.rel (0) target = $region25
    $region24: #{tpu_custom_call.1} parent=1 // pred_region
      %s901 = ssub.s32 32, 32
      %902 = vsyncadd [#allocation3], %s901
      %s904 = sshll.u32 [#allocation2], 4
      %s905 = int_to_ptr.vmem [resolvable:$true] %s904
      %907 = dma.vmem_to_hbm [thread:$0]  %s905, 32, %s5, [#allocation3]
    $region25: #{tpu_custom_call.1} parent=1 // pred_fallthru
      _
    // Predicated region
    $region26: #{tpu_custom_call.1} parent=1 // pred_check
      _
    $region27: #{tpu_custom_call.1} parent=1 // pred_check_branch
      %909 = sbr.rel (0) target = $region29
    $region28: #{tpu_custom_call.1} parent=1 // pred_region
      %s911 = ssub.s32 32, 32
      %912 = vsyncadd [#allocation5], %s911
      %s914 = sshll.u32 [#allocation4], 4
      %s915 = int_to_ptr.vmem [resolvable:$true] %s914
      %917 = dma.vmem_to_hbm [thread:$0]  %s915, 32, %s6, [#allocation5]
    $region29: #{tpu_custom_call.1} parent=1 // pred_fallthru
      _
    // Predicated region
    $region30: #{tpu_custom_call.1} parent=1 // pred_check
      _
    $region31: #{tpu_custom_call.1} parent=1 // pred_check_branch
      %919 = sbr.rel (0) target = $region33
    $region32: #{tpu_custom_call.1} parent=1 // pred_region
      %920 = dma.done [#allocation3], 32
    $region33: #{tpu_custom_call.1} parent=1 // pred_fallthru
      _
    // Predicated region
    $region34: #{tpu_custom_call.1} parent=1 // pred_check
      _
    $region35: #{tpu_custom_call.1} parent=1 // pred_check_branch
      %922 = sbr.rel (0) target = $region37
    $region36: #{tpu_custom_call.1} parent=1 // pred_region
      %923 = dma.done [#allocation5], 32
    $region37: #{tpu_custom_call.1} parent=1 // pred_fallthru
      _
    %924 = vsyncpa [#allocation3], 1
    %925 = vsyncpa [#allocation5], 1

</llo_original>
